<compile_context>
chip_gen: v6e
topology: v6e:2x2x1
jax: 0.10.0
libtpu: 0.0.40
codegen_flags: <defaults>
</compile_context>

<pallas_src>
import functools

import jax
import jax.numpy as jnp
from jax.experimental import pallas as pl
from jax.experimental.pallas import tpu as pltpu


def _gdl_kernel(dx_mask_ref, dy_mask_ref, fake_ref, real_ref, out_ref, *, w):
    f = fake_ref[...]                 # (TB, HW), input dtype
    r = real_ref[...]
    hw = f.shape[-1]

    # shifted[i] == x[(i + s) mod HW]  <=>  roll by (HW - s).  Rolls are per
    # row (i.e. per flattened plane); the wrapped positions are exactly the
    # ones masked out below.
    f_r1 = pltpu.roll(f, hw - 1, axis=1)      # x[h, w+1]   (wrap at w == W-1)
    r_r1 = pltpu.roll(r, hw - 1, axis=1)
    f_rw = pltpu.roll(f, hw - w, axis=1)      # x[h+1, w]   (wrap at h == H-1)
    r_rw = pltpu.roll(r, hw - w, axis=1)

    f_dx = jnp.abs(f_r1 - f)
    r_dx = jnp.abs(r_r1 - r)
    f_dy = jnp.abs(f_rw - f)
    r_dy = jnp.abs(r_rw - r)

    dx_l1 = jnp.abs(f_dx - r_dx).astype(jnp.float32) * dx_mask_ref[...]
    dy_l1 = jnp.abs(f_dy - r_dy).astype(jnp.float32) * dy_mask_ref[...]

    # Lane-wise partial sums for this block; the cross-lane/block reduction
    # happens once, outside the kernel.
    out_ref[0] = jnp.sum(dx_l1 + dy_l1, axis=0, keepdims=True)


def _choose_block_planes(n_planes, hw, itemsize):
    """Planes per grid step, filling a conservative VMEM budget.

    2 inputs x 2 pipeline buffers x (TB * HW * itemsize) plus the in-kernel
    f32 temporaries must stay well below the 32 MiB scoped-VMEM default
    (v7x has only 64 MiB physical VMEM).
    """
    budget_bytes = 4 * 1024 * 1024           # for the 4 pipelined input buffers
    tb = budget_bytes // max(1, 4 * hw * itemsize)
    tb = max(8, (tb // 8) * 8)               # keep the sublane dim a multiple of 8
    tb = min(tb, 4096)
    padded_planes = ((n_planes + 7) // 8) * 8
    return min(tb, padded_planes)


def image_gradient_loss(fake, real):
    """fake, real: (N, C, H, W) arrays. Returns a scalar float32 GDL loss."""
    assert fake.shape == real.shape
    n, c, h, w = fake.shape
    hw = h * w
    n_planes = n * c

    # Free reshapes (row-major, no transpose): full plane on the lane axis.
    fake2 = fake.reshape(n_planes, hw)
    real2 = real.reshape(n_planes, hw)

    tb = _choose_block_planes(n_planes, hw, fake2.dtype.itemsize)
    num_blocks = -(-n_planes // tb)          # cdiv
    padded = num_blocks * tb
    if padded != n_planes:
        # Zero planes contribute exactly 0 to the masked L1 sums.
        pad = ((0, padded - n_planes), (0, 0))
        fake2 = jnp.pad(fake2, pad)
        real2 = jnp.pad(real2, pad)

    # 0/1 masks over the flattened plane: kill the last column (dx) and the
    # last row (dy), which also kills the roll wrap-around values.
    col = jnp.arange(hw, dtype=jnp.int32)
    dx_mask = (col % w != w - 1).astype(jnp.float32).reshape(1, hw)
    dy_mask = (col < (h - 1) * w).astype(jnp.float32).reshape(1, hw)

    flops = 16 * n_planes * hw
    bytes_accessed = (2 * padded * hw * fake2.dtype.itemsize
                      + num_blocks * hw * 4 + 2 * hw * 4)

    partials = pl.pallas_call(
        functools.partial(_gdl_kernel, w=w),
        out_shape=jax.ShapeDtypeStruct((num_blocks, 1, hw), jnp.float32),
        grid=(num_blocks,),
        in_specs=[
            pl.BlockSpec((1, hw), lambda i: (0, 0)),    # dx mask (fetched once)
            pl.BlockSpec((1, hw), lambda i: (0, 0)),    # dy mask (fetched once)
            pl.BlockSpec((tb, hw), lambda i: (i, 0)),   # fake planes
            pl.BlockSpec((tb, hw), lambda i: (i, 0)),   # real planes
        ],
        out_specs=pl.BlockSpec((1, 1, hw), lambda i: (i, 0, 0)),
        compiler_params=pltpu.CompilerParams(
            dimension_semantics=("parallel",)),         # shards across TCs on v7x
        cost_estimate=pl.CostEstimate(
            flops=flops, transcendentals=0, bytes_accessed=bytes_accessed),
    )(dx_mask, dy_mask, fake2, real2)

    # (mean_dx + mean_dy) / 2 == (sum_dx + sum_dy) / (2 * N*C*H*W); the
    # zero-padded planes contribute nothing to the numerator.
    total = n * c * h * w
    return jnp.sum(partials) / (2.0 * total)


def _reference_loss(fake, real):
    """Pure-JAX reference replicating the PyTorch module exactly."""
    def grad(x):
        r = jnp.pad(x, ((0, 0), (0, 0), (0, 0), (0, 1)))[:, :, :, 1:]
        b = jnp.pad(x, ((0, 0), (0, 0), (0, 1), (0, 0)))[:, :, 1:, :]
        dx = jnp.abs(r - x).at[:, :, :, -1].set(0.0)
        dy = jnp.abs(b - x).at[:, :, -1, :].set(0.0)
        return dx, dy

    fdx, fdy = grad(fake)
    rdx, rdy = grad(real)
    return (jnp.mean(jnp.abs(fdx - rdx)) + jnp.mean(jnp.abs(fdy - rdy))) / 2.0


if __name__ == "__main__":
    key = jax.random.PRNGKey(0)
    k1, k2 = jax.random.split(key)
    B, C, H, W = 2, 4, 16, 16
    fake = jax.random.normal(k1, (B, C, H, W), dtype=jnp.float32)
    real = jax.random.normal(k2, (B, C, H, W), dtype=jnp.float32)

    loss = jax.block_until_ready(image_gradient_loss(fake, real))
    ref = jax.block_until_ready(_reference_loss(fake, real))
    assert jnp.allclose(loss, ref, atol=1e-5, rtol=1e-5), (loss, ref)
    print("KERNEL_OK")
</pallas_src>

<mosaic_0001>
module attributes {stable_mosaic.version = 11 : i64} {
  func.func @_gdl_kernel(%arg0: i32, %arg1: memref<1x256xf32, #tpu.memory_space<vmem>>, %arg2: memref<1x256xf32, #tpu.memory_space<vmem>>, %arg3: memref<8x256xf32, #tpu.memory_space<vmem>>, %arg4: memref<8x256xf32, #tpu.memory_space<vmem>>, %arg5: memref<1x1x256xf32, #tpu.memory_space<vmem>>) attributes {dimension_semantics = [#tpu.dimension_semantics<parallel>], iteration_bounds = array<i64: 1>, scalar_prefetch = 0 : i64, scratch_operands = 0 : i64, tpu.core_type = #tpu.core_type<tc>, window_params = [{pipeline_mode = #tpu.pipeline_mode<synchronous>, transform_indices = @transform_0, window_bounds = array<i64: 1, 256>}, {pipeline_mode = #tpu.pipeline_mode<synchronous>, transform_indices = @transform_1, window_bounds = array<i64: 1, 256>}, {transform_indices = @transform_2, window_bounds = array<i64: 8, 256>}, {transform_indices = @transform_3, window_bounds = array<i64: 8, 256>}, {transform_indices = @transform_4, window_bounds = array<i64: 1, 1, 256>}]} {
    %c0 = arith.constant 0 : index
    %c0_0 = arith.constant 0 : index
    %0 = vector.load %arg3[%c0, %c0_0] : memref<8x256xf32, #tpu.memory_space<vmem>>, vector<8x256xf32>
    %c0_1 = arith.constant 0 : index
    %c0_2 = arith.constant 0 : index
    %1 = vector.load %arg4[%c0_1, %c0_2] : memref<8x256xf32, #tpu.memory_space<vmem>>, vector<8x256xf32>
    %c255_i32 = arith.constant 255 : i32
    %2 = tpu.dynamic_rotate %0 by %c255_i32 dim 1 : vector<8x256xf32>, i32 -> vector<8x256xf32>
    %c255_i32_3 = arith.constant 255 : i32
    %3 = tpu.dynamic_rotate %1 by %c255_i32_3 dim 1 : vector<8x256xf32>, i32 -> vector<8x256xf32>
    %c240_i32 = arith.constant 240 : i32
    %4 = tpu.dynamic_rotate %0 by %c240_i32 dim 1 : vector<8x256xf32>, i32 -> vector<8x256xf32>
    %c240_i32_4 = arith.constant 240 : i32
    %5 = tpu.dynamic_rotate %1 by %c240_i32_4 dim 1 : vector<8x256xf32>, i32 -> vector<8x256xf32>
    %6 = arith.subf %2, %0 : vector<8x256xf32>
    %7 = math.absf %6 : vector<8x256xf32>
    %8 = arith.subf %3, %1 : vector<8x256xf32>
    %9 = math.absf %8 : vector<8x256xf32>
    %10 = arith.subf %4, %0 : vector<8x256xf32>
    %11 = math.absf %10 : vector<8x256xf32>
    %12 = arith.subf %5, %1 : vector<8x256xf32>
    %13 = math.absf %12 : vector<8x256xf32>
    %14 = arith.subf %7, %9 : vector<8x256xf32>
    %15 = math.absf %14 : vector<8x256xf32>
    %c0_5 = arith.constant 0 : index
    %c0_6 = arith.constant 0 : index
    %16 = vector.load %arg1[%c0_5, %c0_6] : memref<1x256xf32, #tpu.memory_space<vmem>>, vector<1x256xf32>
    %17 = vector.broadcast %16 : vector<1x256xf32> to vector<8x256xf32>
    %18 = arith.mulf %15, %17 : vector<8x256xf32>
    %19 = arith.subf %11, %13 : vector<8x256xf32>
    %20 = math.absf %19 : vector<8x256xf32>
    %c0_7 = arith.constant 0 : index
    %c0_8 = arith.constant 0 : index
    %21 = vector.load %arg2[%c0_7, %c0_8] : memref<1x256xf32, #tpu.memory_space<vmem>>, vector<1x256xf32>
    %22 = vector.broadcast %21 : vector<1x256xf32> to vector<8x256xf32>
    %23 = arith.mulf %20, %22 : vector<8x256xf32>
    %24 = arith.addf %18, %23 : vector<8x256xf32>
    %cst = arith.constant dense<0.000000e+00> : vector<256xf32>
    %25 = vector.multi_reduction <add>, %24, %cst [0] : vector<8x256xf32> to vector<256xf32>
    %26 = vector.shape_cast %25 : vector<256xf32> to vector<1x256xf32>
    %c0_9 = arith.constant 0 : index
    %c0_10 = arith.constant 0 : index
    %c0_11 = arith.constant 0 : index
    %27 = vector.load %arg5[%c0_9, %c0_10, %c0_11] : memref<1x1x256xf32, #tpu.memory_space<vmem>>, vector<1x1x256xf32>
    %28 = vector.shape_cast %27 : vector<1x1x256xf32> to vector<1x256xf32>
    %29 = vector.shape_cast %26 : vector<1x256xf32> to vector<1x1x256xf32>
    tpu.vector_store %arg5[%c0_9, %c0_10, %c0_11], %29 {strides = array<i32>} : memref<1x1x256xf32, #tpu.memory_space<vmem>>, vector<1x1x256xf32>,
    return
  }
  func.func @transform_0(%arg0: i32) -> (i32, i32) {
    %c0_i32 = arith.constant 0 : i32
    %c0_i32_0 = arith.constant 0 : i32
    %c0_i32_1 = arith.constant 0 : i32
    return %c0_i32, %c0_i32_0 : i32, i32
  }
  func.func @transform_1(%arg0: i32) -> (i32, i32) {
    %c0_i32 = arith.constant 0 : i32
    %c0_i32_0 = arith.constant 0 : i32
    %c0_i32_1 = arith.constant 0 : i32
    return %c0_i32, %c0_i32_0 : i32, i32
  }
  func.func @transform_2(%arg0: i32) -> (i32, i32) {
    %c0_i32 = arith.constant 0 : i32
    %c0_i32_0 = arith.constant 0 : i32
    return %arg0, %c0_i32 : i32, i32
  }
  func.func @transform_3(%arg0: i32) -> (i32, i32) {
    %c0_i32 = arith.constant 0 : i32
    %c0_i32_0 = arith.constant 0 : i32
    return %arg0, %c0_i32 : i32, i32
  }
  func.func @transform_4(%arg0: i32) -> (i32, i32, i32) {
    %c0_i32 = arith.constant 0 : i32
    %c0_i32_0 = arith.constant 0 : i32
    %c0_i32_1 = arith.constant 0 : i32
    return %arg0, %c0_i32, %c0_i32_0 : i32, i32, i32
  }
}

</mosaic_0001>

<llo_original>
// kernel: tpu_custom_call.1
$region0: #{tpu_custom_call.1}
  #allocation0 [shape = 'u32[]', space=smem, size = 0x4, offset = 0x4, fixed_abs, tag = 'smem constant byte address 0x4 - core index']
  #allocation1 [shape = 'u32[144,128]{1,0:T(1,128)}', space=vmem, size = 0x12000, scoped, tag = 'internal scratch']
  %s0 = inlined_call_operand.hbm [shape: f32[1,256], index: 0, kind: input, shape index: {}]
  %s1 = inlined_call_operand.hbm [shape: f32[1,256], index: 1, kind: input, shape index: {}]
  %s2 = inlined_call_operand.hbm [shape: f32[8,256], index: 2, kind: input, shape index: {}]
  %s3 = inlined_call_operand.hbm [shape: f32[8,256], index: 3, kind: input, shape index: {}]
  %s4 = inlined_call_operand.hbm [shape: f32[1,1,256], index: 4, kind: output, shape index: {}]
  %s5 = sld [smem:[#allocation0]]
  $region42: #{tpu_custom_call.1} parent=0
    _
  %s7 = ssub.s32 1, %s5
  %s8 = scalar_select 0, %s7, %s5
  $region1: #{tpu_custom_call.1} parent=0
    #allocation2 [shape = 'u8[1024]{0}', space=vmem, size = 0x400, scoped, tag = 'input window, operand 0, single buffered']
    #allocation3 [shape = 's32[1]{0}', space=sflag, size = 0x4, scoped, tag = 'scoped memory for tpu_custom_call.1']
    #allocation4 [shape = 's32[1]{0}', space=sflag, size = 0x4, scoped, tag = 'scoped memory for tpu_custom_call.1']
    #allocation5 [shape = 'u8[1024]{0}', space=vmem, size = 0x400, scoped, tag = 'input window, operand 1, single buffered']
    #allocation6 [shape = 's32[1]{0}', space=sflag, size = 0x4, scoped, tag = 'scoped memory for tpu_custom_call.1']
    #allocation7 [shape = 'u8[8192]{0}', space=vmem, size = 0x2000, scoped, tag = 'input window, operand 2, single buffered']
    #allocation8 [shape = 'u8[8192]{0}', space=vmem, size = 0x2000, scoped, tag = 'input window, operand 3, single buffered']
    #allocation9 [shape = 's32[1]{0}', space=sflag, size = 0x4, scoped, tag = 'scoped memory for tpu_custom_call.1']
    #allocation10 [shape = 'u8[1024]{0}', space=vmem, size = 0x400, scoped, tag = 'output window, operand 0, single buffered']
    %9 = vsyncpa [#allocation3], 0
    %10 = vsyncpa [#allocation6], 0
    %11 = vsyncpa [#allocation9], 0
    %12 = vsyncpa [#allocation4], 0
    // Predicated region
    $region2: #{tpu_custom_call.1} parent=1 // pred_check
      _
    $region3: #{tpu_custom_call.1} parent=1 // pred_check_branch
      %14 = sbr.rel (0) target = $region5
    $region4: #{tpu_custom_call.1} parent=1 // pred_region
      %s16 = ssub.s32 32, 32
      %17 = vsyncadd [#allocation3], %s16
      %s19 = sshll.u32 [#allocation2], 4
      %s20 = int_to_ptr.vmem [resolvable:$true] %s19
      %22 = dma.hbm_to_vmem [thread:$0]  %s0, 32, %s20, [#allocation3]
    $region5: #{tpu_custom_call.1} parent=1 // pred_fallthru
      _
    // Predicated region
    $region6: #{tpu_custom_call.1} parent=1 // pred_check
      _
    $region7: #{tpu_custom_call.1} parent=1 // pred_check_branch
      %24 = sbr.rel (0) target = $region9
    $region8: #{tpu_custom_call.1} parent=1 // pred_region
      %s26 = ssub.s32 32, 32
      %27 = vsyncadd [#allocation6], %s26
      %s29 = sshll.u32 [#allocation5], 4
      %s30 = int_to_ptr.vmem [resolvable:$true] %s29
      %32 = dma.hbm_to_vmem [thread:$0]  %s1, 32, %s30, [#allocation6]
    $region9: #{tpu_custom_call.1} parent=1 // pred_fallthru
      _
    // Predicated region
    $region10: #{tpu_custom_call.1} parent=1 // pred_check
      _
    $region11: #{tpu_custom_call.1} parent=1 // pred_check_branch
      %34 = sbr.rel (0) target = $region13
    $region12: #{tpu_custom_call.1} parent=1 // pred_region
      %s36 = ssub.s32 256, 256
      %37 = vsyncadd [#allocation6], %s36
      %s39 = sshll.u32 [#allocation7], 4
      %s40 = int_to_ptr.vmem [resolvable:$true] %s39
      %42 = dma.hbm_to_vmem [thread:$0]  %s2, 256, %s40, [#allocation6]
    $region13: #{tpu_custom_call.1} parent=1 // pred_fallthru
      _
    // Predicated region
    $region14: #{tpu_custom_call.1} parent=1 // pred_check
      _
    $region15: #{tpu_custom_call.1} parent=1 // pred_check_branch
      %44 = sbr.rel (0) target = $region17
    $region16: #{tpu_custom_call.1} parent=1 // pred_region
      %s46 = ssub.s32 256, 256
      %47 = vsyncadd [#allocation9], %s46
      %s49 = sshll.u32 [#allocation8], 4
      %s50 = int_to_ptr.vmem [resolvable:$true] %s49
      %52 = dma.hbm_to_vmem [thread:$0]  %s3, 256, %s50, [#allocation9]
    $region17: #{tpu_custom_call.1} parent=1 // pred_fallthru
      _
    // Predicated region
    $region18: #{tpu_custom_call.1} parent=1 // pred_check
      _
    $region19: #{tpu_custom_call.1} parent=1 // pred_check_branch
      %54 = sbr.rel (0) target = $region21
    $region20: #{tpu_custom_call.1} parent=1 // pred_region
      %55 = dma.done [#allocation3], 32
    $region21: #{tpu_custom_call.1} parent=1 // pred_fallthru
      _
    // Predicated region
    $region22: #{tpu_custom_call.1} parent=1 // pred_check
      _
    $region23: #{tpu_custom_call.1} parent=1 // pred_check_branch
      %57 = sbr.rel (0) target = $region25
    $region24: #{tpu_custom_call.1} parent=1 // pred_region
      %58 = dma.done [#allocation6], 32
    $region25: #{tpu_custom_call.1} parent=1 // pred_fallthru
      _
    // Predicated region
    $region26: #{tpu_custom_call.1} parent=1 // pred_check
      _
    $region27: #{tpu_custom_call.1} parent=1 // pred_check_branch
      %60 = sbr.rel (0) target = $region29
    $region28: #{tpu_custom_call.1} parent=1 // pred_region
      %61 = dma.done [#allocation6], 256
    $region29: #{tpu_custom_call.1} parent=1 // pred_fallthru
      _
    // Predicated region
    $region30: #{tpu_custom_call.1} parent=1 // pred_check
      _
    $region31: #{tpu_custom_call.1} parent=1 // pred_check_branch
      %63 = sbr.rel (0) target = $region33
    $region32: #{tpu_custom_call.1} parent=1 // pred_region
      %64 = dma.done [#allocation9], 256
    $region33: #{tpu_custom_call.1} parent=1 // pred_fallthru
      _
    %v65 = vld [vmem:[#allocation7] sm:$0xff]
    %v66 = vld [vmem:[#allocation7 + $0x8] sm:$0xff]
    %v67 = vld [vmem:[#allocation8] sm:$0xff]
    %v68 = vld [vmem:[#allocation8 + $0x8] sm:$0xff]
    %69 = vrot.lane.b32.xlu0 %v65, 127
    %v70 = vpop.permute.xlu0 %69
    %71 = vrot.lane.b32.xlu0 %v66, 127
    %v72 = vpop.permute.xlu0 %71
    %v73 = vlaneseq
    %v74 = vand.u32 %v73, 127
    %vm75 = vcmp.lt.s32.totalorder %v74, 127
    %v76 = vsel %vm75, %v70, %v72
    %v77 = vsel %vm75, %v72, %v70
    %78 = vrot.lane.b32.xlu0 %v67, 127
    %v79 = vpop.permute.xlu0 %78
    %80 = vrot.lane.b32.xlu0 %v68, 127
    %v81 = vpop.permute.xlu0 %80
    %v82 = vsel %vm75, %v79, %v81
    %v83 = vsel %vm75, %v81, %v79
    %84 = vrot.lane.b32.xlu0 %v65, 112
    %v85 = vpop.permute.xlu0 %84
    %86 = vrot.lane.b32.xlu0 %v66, 112
    %v87 = vpop.permute.xlu0 %86
    %vm88 = vcmp.lt.s32.totalorder %v74, 112
    %v89 = vsel %vm88, %v85, %v87
    %v90 = vsel %vm88, %v87, %v85
    %91 = vrot.lane.b32.xlu0 %v67, 112
    %v92 = vpop.permute.xlu0 %91
    %93 = vrot.lane.b32.xlu0 %v68, 112
    %v94 = vpop.permute.xlu0 %93
    %v95 = vsel %vm88, %v92, %v94
    %v96 = vsel %vm88, %v94, %v92
    %v97 = vsub.f32 %v76, %v65
    %v98 = vsub.f32 %v77, %v66
    %v99 = vand.u32 2147483647, %v97
    %v100 = vand.u32 2147483647, %v98
    %v101 = vsub.f32 %v82, %v67
    %v102 = vsub.f32 %v83, %v68
    %v103 = vand.u32 2147483647, %v101
    %v104 = vand.u32 2147483647, %v102
    %v105 = vsub.f32 %v89, %v65
    %v106 = vsub.f32 %v90, %v66
    %v107 = vand.u32 2147483647, %v105
    %v108 = vand.u32 2147483647, %v106
    %v109 = vsub.f32 %v95, %v67
    %v110 = vsub.f32 %v96, %v68
    %v111 = vand.u32 2147483647, %v109
    %v112 = vand.u32 2147483647, %v110
    %v113 = vsub.f32 %v99, %v103
    %v114 = vsub.f32 %v100, %v104
    %v115 = vand.u32 2147483647, %v113
    %v116 = vand.u32 2147483647, %v114
    %v117 = vld [vmem:[#allocation2] sm:$0x3]
    %v119 = vlaneseq
    %v120 = vshrl.u32 %v119, 7
    %v121 = vsub.s32 0, %v120
    %v122 = vrot.slane %v117, %v121
    %v123 = vlaneseq
    %v124 = vshrl.u32 %v123, 7
    %v125 = vsub.s32 1, %v124
    %v126 = vrot.slane %v117, %v125
    %v129 = vmul.f32 %v115, %v122
    %v130 = vmul.f32 %v116, %v126
    %v131 = vsub.f32 %v107, %v111
    %v132 = vsub.f32 %v108, %v112
    %v133 = vand.u32 2147483647, %v131
    %v134 = vand.u32 2147483647, %v132
    %v135 = vld [vmem:[#allocation5] sm:$0x3]
    %v137 = vlaneseq
    %v138 = vshrl.u32 %v137, 7
    %v139 = vsub.s32 0, %v138
    %v140 = vrot.slane %v135, %v139
    %v141 = vlaneseq
    %v142 = vshrl.u32 %v141, 7
    %v143 = vsub.s32 1, %v142
    %v144 = vrot.slane %v135, %v143
    %v147 = vmul.f32 %v133, %v140
    %v148 = vmul.f32 %v134, %v144
    %v149 = vadd.f32 %v129, %v147
    %v150 = vadd.f32 %v130, %v148
    %v151 = vrot.slane %v149, 4
    %v152 = vadd.f32 %v149, %v151
    %v153 = vrot.slane %v152, 2
    %v154 = vadd.f32 %v152, %v153
    %v155 = vrot.slane %v154, 1
    %v156 = vadd.f32 %v154, %v155
    %v157 = vrot.slane %v150, 4
    %v158 = vadd.f32 %v150, %v157
    %v159 = vrot.slane %v158, 2
    %v160 = vadd.f32 %v158, %v159
    %v161 = vrot.slane %v160, 1
    %v162 = vadd.f32 %v160, %v161
    %v165 = vcombine.low %v156, %v162
    %v167 = vunpack.c.l.s4 1966171168
    %v168 = vunpack.c.0.s8 %v167
    %v169 = vlaneseq
    %v170 = vshrl.u32 %v169, 7
    %v171 = vsub.s32 %v168, %v170
    %v172 = vrot.slane %v165, %v171
    %v174 = vunpack.c.l.s4 1966171168
    %v175 = vunpack.c.0.s8 %v174
    %v176 = vlaneseq
    %v177 = vshrl.u32 %v176, 7
    %v178 = vsub.s32 %v175, %v177
    %v179 = vrot.slane %v172, %v178
    %v181 = vlaneseq
    %vm182 = vcmp.ge.s32.totalorder %v181, 0
    %vm183 = vcmp.lt.s32.totalorder %v181, 256
    %vm184 = vmand %vm182, %vm183
    %185 = vst.msk [vmem:[#allocation10] sm:$0x3] %vm184, %v179
    // Predicated region
    $region34: #{tpu_custom_call.1} parent=1 // pred_check
      _
    $region35: #{tpu_custom_call.1} parent=1 // pred_check_branch
      %187 = sbr.rel (0) target = $region37
    $region36: #{tpu_custom_call.1} parent=1 // pred_region
      %s189 = ssub.s32 32, 32
      %190 = vsyncadd [#allocation4], %s189
      %s192 = sshll.u32 [#allocation10], 4
      %s193 = int_to_ptr.vmem [resolvable:$true] %s192
      %195 = dma.vmem_to_hbm [thread:$0]  %s193, 32, %s4, [#allocation4]
    $region37: #{tpu_custom_call.1} parent=1 // pred_fallthru
      _
    // Predicated region
    $region38: #{tpu_custom_call.1} parent=1 // pred_check
      _
    $region39: #{tpu_custom_call.1} parent=1 // pred_check_branch
      %197 = sbr.rel (0) target = $region41
    $region40: #{tpu_custom_call.1} parent=1 // pred_region
      %198 = dma.done [#allocation4], 32
    $region41: #{tpu_custom_call.1} parent=1 // pred_fallthru
      _
    %199 = vsyncpa [#allocation3], 1
    %200 = vsyncpa [#allocation6], 1
    %201 = vsyncpa [#allocation9], 1
    %202 = vsyncpa [#allocation4], 1

</llo_original>
